<compile_context>
chip_gen: v7x
topology: tpu7x:2x2x1
jax: 0.10.0
libtpu: 0.0.40
codegen_flags: <defaults>
</compile_context>

<pallas_src>
import functools

import jax
import jax.numpy as jnp
from jax.experimental import pallas as pl
from jax.experimental.pallas import tpu as pltpu


# ----------------------------------------------------------------------------
# Kernel: fused Bottleneck block for one batch element.
# Layout: activations are (channels, H*W) -- channels on sublanes, pixels on lanes.
# ----------------------------------------------------------------------------
def bottleneck_kernel(x_ref, w1_ref, s1_ref, b1_ref,
                      w2_ref, s2_ref, b2_ref,
                      w3_ref, s3_ref, b3_ref,
                      *rest, W, lane_pad, has_downsample):
    if has_downsample:
        wd_ref, sd_ref, bd_ref, o_ref, pad_ref = rest
    else:
        o_ref, pad_ref = rest

    width = w1_ref.shape[0]          # bottleneck width
    M = x_ref.shape[-1]              # H * W (pixels, on the lane axis)

    xT = x_ref[0]                    # (Cin, M) f32

    # ---- conv1 (1x1) + BN1 + ReLU -> (width, M) ---------------------------------
    h1 = jnp.dot(w1_ref[...], xT.astype(jnp.bfloat16),
                 preferred_element_type=jnp.float32)
    h1 = jnp.maximum(h1 * s1_ref[...] + b1_ref[...], 0.0)

    # ---- conv2 (3x3, pad=1, stride=1) as ONE im2col matmul, K = 9*width ---------
    # Stage h1 into a lane-padded VMEM buffer (pads hold the zero padding for the
    # rows above/below the image); each of the 9 taps is a static lane-slice of it.
    pad_ref[:, 0:lane_pad] = jnp.zeros((width, lane_pad), jnp.float32)
    pad_ref[:, lane_pad + M:lane_pad + M + lane_pad] = jnp.zeros(
        (width, lane_pad), jnp.float32)
    pad_ref[:, lane_pad:lane_pad + M] = h1           # vreg-aligned interior store

    px = jax.lax.broadcasted_iota(jnp.int32, (1, M), 1) % W   # column of each pixel
    pieces = []
    for kh in range(3):
        for kw in range(3):
            start = lane_pad + (kh - 1) * W + (kw - 1)
            tap = pad_ref[:, start:start + M]                  # (width, M)
            if kw == 0:      # left tap wraps from previous row at column 0
                tap = jnp.where(px >= 1, tap, 0.0)
            elif kw == 2:    # right tap wraps to next row at column W-1
                tap = jnp.where(px <= W - 2, tap, 0.0)
            pieces.append(tap)
    patches = jnp.concatenate(pieces, axis=0).astype(jnp.bfloat16)   # (9*width, M)

    h2 = jnp.dot(w2_ref[...], patches, preferred_element_type=jnp.float32)
    h2 = jnp.maximum(h2 * s2_ref[...] + b2_ref[...], 0.0)

    # ---- conv3 (1x1) + BN3 -> (Cout, M) ------------------------------------------
    h3 = jnp.dot(w3_ref[...], h2.astype(jnp.bfloat16),
                 preferred_element_type=jnp.float32)
    h3 = h3 * s3_ref[...] + b3_ref[...]

    # ---- shortcut: projection (conv1x1 + BN) or identity -------------------------
    if has_downsample:
        idn = jnp.dot(wd_ref[...], xT.astype(jnp.bfloat16),
                      preferred_element_type=jnp.float32)
        idn = idn * sd_ref[...] + bd_ref[...]
    else:
        idn = xT

    out = jnp.maximum(h3 + idn, 0.0)                 # (Cout, M), 256 dense lanes
    o_ref[...] = out.reshape(o_ref.shape)


# ----------------------------------------------------------------------------
# Wrapper: NCHW in / NCHW out, one pallas_call, grid over batch only.
# ----------------------------------------------------------------------------
def bottleneck_forward(x_nchw, params, *, has_downsample):
    N, cin, H, W = x_nchw.shape
    M = H * W
    width = params['w1t'].shape[0]
    cout = params['w3t'].shape[0]
    if not has_downsample:
        assert cin == cout, "identity shortcut requires inplanes == planes*expansion"

    # vreg-aligned lane halo large enough for a +-(W+1) shift
    lane_pad = max(128, -(-(W + 1) // 128) * 128)

    # NCHW -> (N, C, H*W): free reshape, pixels land on the lane axis.
    x3 = x_nchw.reshape(N, cin, M).astype(jnp.float32)

    # Weights in channel-major ("transposed") form, bf16 for the MXU.
    w1t = params['w1t'].astype(jnp.bfloat16)                        # (width, cin)
    w2t = jnp.transpose(params['w2'], (3, 0, 1, 2)).reshape(
        width, 9 * width).astype(jnp.bfloat16)                      # (width, 9*width)
    w3t = params['w3t'].astype(jnp.bfloat16)                        # (cout, width)

    operands = [x3, w1t, params['s1'], params['b1'],
                w2t, params['s2'], params['b2'],
                w3t, params['s3'], params['b3']]
    wfull = lambda n: (0, 0)
    in_specs = [
        pl.BlockSpec((1, cin, M), lambda n: (n, 0, 0)),
        pl.BlockSpec((width, cin), wfull),
        pl.BlockSpec((width, 1), wfull), pl.BlockSpec((width, 1), wfull),
        pl.BlockSpec((width, 9 * width), wfull),
        pl.BlockSpec((width, 1), wfull), pl.BlockSpec((width, 1), wfull),
        pl.BlockSpec((cout, width), wfull),
        pl.BlockSpec((cout, 1), wfull), pl.BlockSpec((cout, 1), wfull),
    ]
    if has_downsample:
        operands += [params['wdt'].astype(jnp.bfloat16),
                     params['sd'], params['bd']]
        in_specs += [pl.BlockSpec((cout, cin), wfull),
                     pl.BlockSpec((cout, 1), wfull),
                     pl.BlockSpec((cout, 1), wfull)]

    kernel = functools.partial(bottleneck_kernel, W=W, lane_pad=lane_pad,
                               has_downsample=has_downsample)

    # NOTE: at large H*W this grid should additionally tile the pixel axis; at the
    # test sizes a whole (C, H*W) plane per batch element fits VMEM comfortably.
    out = pl.pallas_call(
        kernel,
        out_shape=jax.ShapeDtypeStruct((N, cout, M), jnp.float32),
        grid=(N,),
        in_specs=in_specs,
        out_specs=pl.BlockSpec((1, cout, M), lambda n: (n, 0, 0)),
        scratch_shapes=[pltpu.VMEM((width, M + 2 * lane_pad), jnp.float32)],
        compiler_params=pltpu.CompilerParams(
            dimension_semantics=("parallel",)),
    )(*operands)

    return out.reshape(N, cout, H, W)


# ----------------------------------------------------------------------------
# Exact f32 reference (inference-mode BN) for correctness checking.
# ----------------------------------------------------------------------------
def bottleneck_reference(x, params, has_downsample):
    hp = jax.lax.Precision.HIGHEST

    def bn(y, s, b):
        return y * s.reshape(1, -1, 1, 1) + b.reshape(1, -1, 1, 1)

    h = jnp.einsum('oi,nihw->nohw', params['w1t'], x, precision=hp)
    h = jax.nn.relu(bn(h, params['s1'], params['b1']))
    h = jax.lax.conv_general_dilated(
        h, params['w2'], window_strides=(1, 1), padding=((1, 1), (1, 1)),
        dimension_numbers=('NCHW', 'HWIO', 'NCHW'), precision=hp)
    h = jax.nn.relu(bn(h, params['s2'], params['b2']))
    h = jnp.einsum('oi,nihw->nohw', params['w3t'], h, precision=hp)
    h = bn(h, params['s3'], params['b3'])
    if has_downsample:
        idn = bn(jnp.einsum('oi,nihw->nohw', params['wdt'], x, precision=hp),
                 params['sd'], params['bd'])
    else:
        idn = x
    return jax.nn.relu(h + idn)


# ----------------------------------------------------------------------------
# Deterministic synthetic parameters (He-init convs, folded inference BN).
# ----------------------------------------------------------------------------
def init_params(key, inplanes, planes, base_width=64, groups=1):
    expansion = 4
    width = int(planes * (base_width / 64.0)) * groups
    cout = planes * expansion
    has_downsample = (inplanes != cout)
    keys = iter(jax.random.split(key, 24))
    eps = 1e-5

    def conv_w(shape, fan_in):
        return (jax.random.normal(next(keys), shape, jnp.float32)
                * jnp.sqrt(2.0 / fan_in))

    def bn(c):
        gamma = 1.0 + 0.1 * jax.random.normal(next(keys), (c,), jnp.float32)
        beta = 0.1 * jax.random.normal(next(keys), (c,), jnp.float32)
        mean = 0.1 * jax.random.normal(next(keys), (c,), jnp.float32)
        var = 1.0 + 0.1 * jax.random.uniform(next(keys), (c,), jnp.float32)
        scale = gamma / jnp.sqrt(var + eps)
        bias = beta - mean * scale
        return scale.reshape(c, 1), bias.reshape(c, 1)

    p = {'w1t': conv_w((width, inplanes), inplanes)}          # conv1 1x1: (out, in)
    p['s1'], p['b1'] = bn(width)
    p['w2'] = conv_w((3, 3, width, width), 9 * width)         # conv2 3x3: (kh, kw, in, out)
    p['s2'], p['b2'] = bn(width)
    p['w3t'] = conv_w((cout, width), width)                   # conv3 1x1: (out, in)
    p['s3'], p['b3'] = bn(cout)
    if has_downsample:
        p['wdt'] = conv_w((cout, inplanes), inplanes)         # downsample 1x1
        p['sd'], p['bd'] = bn(cout)
    return p, has_downsample


# ----------------------------------------------------------------------------
if __name__ == "__main__":
    key = jax.random.PRNGKey(0)
    kx1, kx2, kp1, kp2 = jax.random.split(key, 4)

    fwd = jax.jit(bottleneck_forward, static_argnames=("has_downsample",))

    N, H, W = 2, 16, 16
    planes = 8                                   # width = 8, out channels = 32

    # Config A: inplanes != planes*expansion -> projection shortcut (conv1x1 + BN).
    x_a = jax.random.normal(kx1, (N, 8, H, W), jnp.float32)
    params_a, ds_a = init_params(kp1, 8, planes)
    out_a = jax.block_until_ready(fwd(x_a, params_a, has_downsample=ds_a))
    ref_a = bottleneck_reference(x_a, params_a, ds_a)
    assert out_a.shape == (N, 4 * planes, H, W), out_a.shape
    assert bool(jnp.all(jnp.isfinite(out_a)))
    assert jnp.allclose(out_a, ref_a, atol=1e-1, rtol=5e-2), \
        float(jnp.max(jnp.abs(out_a - ref_a)))

    # Config B: inplanes == planes*expansion -> identity shortcut.
    x_b = jax.random.normal(kx2, (N, 32, H, W), jnp.float32)
    params_b, ds_b = init_params(kp2, 32, planes)
    out_b = jax.block_until_ready(fwd(x_b, params_b, has_downsample=ds_b))
    ref_b = bottleneck_reference(x_b, params_b, ds_b)
    assert out_b.shape == (N, 32, H, W), out_b.shape
    assert bool(jnp.all(jnp.isfinite(out_b)))
    assert jnp.allclose(out_b, ref_b, atol=1e-1, rtol=5e-2), \
        float(jnp.max(jnp.abs(out_b - ref_b)))

    print("KERNEL_OK")
</pallas_src>

<mosaic_0001>
module attributes {stable_mosaic.version = 11 : i64} {
  func.func @bottleneck_kernel(%arg0: i32, %arg1: memref<1x8x256xf32, #tpu.memory_space<vmem>>, %arg2: memref<8x8xbf16, #tpu.memory_space<vmem>>, %arg3: memref<8x1xf32, #tpu.memory_space<vmem>>, %arg4: memref<8x1xf32, #tpu.memory_space<vmem>>, %arg5: memref<8x72xbf16, #tpu.memory_space<vmem>>, %arg6: memref<8x1xf32, #tpu.memory_space<vmem>>, %arg7: memref<8x1xf32, #tpu.memory_space<vmem>>, %arg8: memref<32x8xbf16, #tpu.memory_space<vmem>>, %arg9: memref<32x1xf32, #tpu.memory_space<vmem>>, %arg10: memref<32x1xf32, #tpu.memory_space<vmem>>, %arg11: memref<32x8xbf16, #tpu.memory_space<vmem>>, %arg12: memref<32x1xf32, #tpu.memory_space<vmem>>, %arg13: memref<32x1xf32, #tpu.memory_space<vmem>>, %arg14: memref<1x32x256xf32, #tpu.memory_space<vmem>>, %arg15: memref<8x512xf32, #tpu.memory_space<vmem>>) attributes {dimension_semantics = [#tpu.dimension_semantics<parallel>], iteration_bounds = array<i64: 2>, scalar_prefetch = 0 : i64, scratch_operands = 1 : i64, tpu.core_type = #tpu.core_type<tc>, window_params = [{transform_indices = @transform_0, window_bounds = array<i64: 1, 8, 256>}, {pipeline_mode = #tpu.pipeline_mode<synchronous>, transform_indices = @transform_1, window_bounds = array<i64: 8, 8>}, {pipeline_mode = #tpu.pipeline_mode<synchronous>, transform_indices = @transform_2, window_bounds = array<i64: 8, 1>}, {pipeline_mode = #tpu.pipeline_mode<synchronous>, transform_indices = @transform_3, window_bounds = array<i64: 8, 1>}, {pipeline_mode = #tpu.pipeline_mode<synchronous>, transform_indices = @transform_4, window_bounds = array<i64: 8, 72>}, {pipeline_mode = #tpu.pipeline_mode<synchronous>, transform_indices = @transform_5, window_bounds = array<i64: 8, 1>}, {pipeline_mode = #tpu.pipeline_mode<synchronous>, transform_indices = @transform_6, window_bounds = array<i64: 8, 1>}, {pipeline_mode = #tpu.pipeline_mode<synchronous>, transform_indices = @transform_7, window_bounds = array<i64: 32, 8>}, {pipeline_mode = #tpu.pipeline_mode<synchronous>, transform_indices = @transform_8, window_bounds = array<i64: 32, 1>}, {pipeline_mode = #tpu.pipeline_mode<synchronous>, transform_indices = @transform_9, window_bounds = array<i64: 32, 1>}, {pipeline_mode = #tpu.pipeline_mode<synchronous>, transform_indices = @transform_10, window_bounds = array<i64: 32, 8>}, {pipeline_mode = #tpu.pipeline_mode<synchronous>, transform_indices = @transform_11, window_bounds = array<i64: 32, 1>}, {pipeline_mode = #tpu.pipeline_mode<synchronous>, transform_indices = @transform_12, window_bounds = array<i64: 32, 1>}, {transform_indices = @transform_13, window_bounds = array<i64: 1, 32, 256>}]} {
    %c0 = arith.constant 0 : index
    %c0_0 = arith.constant 0 : index
    %c0_1 = arith.constant 0 : index
    %0 = vector.load %arg1[%c0, %c0_0, %c0_1] : memref<1x8x256xf32, #tpu.memory_space<vmem>>, vector<1x8x256xf32>
    %1 = vector.shape_cast %0 : vector<1x8x256xf32> to vector<8x256xf32>
    %c0_2 = arith.constant 0 : index
    %c0_3 = arith.constant 0 : index
    %2 = vector.load %arg2[%c0_2, %c0_3] : memref<8x8xbf16, #tpu.memory_space<vmem>>, vector<8x8xbf16>
    %3 = arith.truncf %1 : vector<8x256xf32> to vector<8x256xbf16>
    %cst = arith.constant dense<0.000000e+00> : vector<8x256xf32>
    %4 = tpu.matmul %2, %3, %cst {dimension_numbers = #tpu.dot_dimension_numbers<[1], [0], [0], [1], [0, 0, 1, 1], [], []>} : vector<8x8xbf16>, vector<8x256xbf16>, vector<8x256xf32> -> vector<8x256xf32>
    %c0_4 = arith.constant 0 : index
    %c0_5 = arith.constant 0 : index
    %5 = vector.load %arg3[%c0_4, %c0_5] : memref<8x1xf32, #tpu.memory_space<vmem>>, vector<8x1xf32>
    %6 = vector.broadcast %5 : vector<8x1xf32> to vector<8x256xf32>
    %7 = arith.mulf %4, %6 : vector<8x256xf32>
    %c0_6 = arith.constant 0 : index
    %c0_7 = arith.constant 0 : index
    %8 = vector.load %arg4[%c0_6, %c0_7] : memref<8x1xf32, #tpu.memory_space<vmem>>, vector<8x1xf32>
    %9 = vector.broadcast %8 : vector<8x1xf32> to vector<8x256xf32>
    %10 = arith.addf %7, %9 : vector<8x256xf32>
    %cst_8 = arith.constant 0.000000e+00 : f32
    %11 = vector.broadcast %cst_8 : f32 to vector<8x256xf32>
    %12 = arith.maximumf %10, %11 : vector<8x256xf32>
    %cst_9 = arith.constant 0.000000e+00 : f32
    %13 = vector.broadcast %cst_9 : f32 to vector<8x128xf32>
    %c0_10 = arith.constant 0 : index
    %c0_11 = arith.constant 0 : index
    %14 = vector.load %arg15[%c0_10, %c0_11] : memref<8x512xf32, #tpu.memory_space<vmem>>, vector<8x128xf32>
    tpu.vector_store %arg15[%c0_10, %c0_11], %13 {strides = array<i32>} : memref<8x512xf32, #tpu.memory_space<vmem>>, vector<8x128xf32>,
    %cst_12 = arith.constant 0.000000e+00 : f32
    %15 = vector.broadcast %cst_12 : f32 to vector<8x128xf32>
    %c0_13 = arith.constant 0 : index
    %c384 = arith.constant 384 : index
    %16 = vector.load %arg15[%c0_13, %c384] : memref<8x512xf32, #tpu.memory_space<vmem>>, vector<8x128xf32>
    tpu.vector_store %arg15[%c0_13, %c384], %15 {strides = array<i32>} : memref<8x512xf32, #tpu.memory_space<vmem>>, vector<8x128xf32>,
    %c0_14 = arith.constant 0 : index
    %c128 = arith.constant 128 : index
    %17 = vector.load %arg15[%c0_14, %c128] : memref<8x512xf32, #tpu.memory_space<vmem>>, vector<8x256xf32>
    tpu.vector_store %arg15[%c0_14, %c128], %12 {strides = array<i32>} : memref<8x512xf32, #tpu.memory_space<vmem>>, vector<8x256xf32>,
    %18 = tpu.iota {dimensions = array<i32: 1>} : vector<1x256xi32>
    %c16_i32 = arith.constant 16 : i32
    %c0_i32 = arith.constant 0 : i32
    %19 = arith.cmpi eq, %c16_i32, %c0_i32 : i32
    %c1_i32 = arith.constant 1 : i32
    %20 = arith.select %19, %c1_i32, %c16_i32 : i32
    %21 = vector.broadcast %20 : i32 to vector<1x256xi32>
    %22 = arith.remsi %18, %21 : vector<1x256xi32>
    %c0_i32_15 = arith.constant 0 : i32
    %23 = vector.broadcast %c0_i32_15 : i32 to vector<1x256xi32>
    %24 = arith.cmpi ne, %22, %23 : vector<1x256xi32>
    %c0_i32_16 = arith.constant 0 : i32
    %25 = vector.broadcast %c0_i32_16 : i32 to vector<1x256xi32>
    %26 = arith.cmpi slt, %22, %25 : vector<1x256xi32>
    %c0_i32_17 = arith.constant 0 : i32
    %27 = arith.cmpi slt, %20, %c0_i32_17 : i32
    %28 = vector.broadcast %27 : i1 to vector<1x256xi1>
    %29 = vector.broadcast %28 : vector<1x256xi1> to vector<1x256xi1>
    %30 = arith.xori %26, %29 : vector<1x256xi1>
    %31 = arith.andi %30, %24 : vector<1x256xi1>
    %32 = vector.broadcast %20 : i32 to vector<1x256xi32>
    %33 = arith.addi %22, %32 : vector<1x256xi32>
    %34 = arith.select %31, %33, %22 : vector<1x256xi1>, vector<1x256xi32>
    %c0_18 = arith.constant 0 : index
    %c111 = arith.constant 111 : index
    %35 = vector.load %arg15[%c0_18, %c111] : memref<8x512xf32, #tpu.memory_space<vmem>>, vector<8x256xf32>
    %c1_i32_19 = arith.constant 1 : i32
    %36 = vector.broadcast %c1_i32_19 : i32 to vector<1x256xi32>
    %37 = arith.cmpi sge, %34, %36 : vector<1x256xi32>
    %cst_20 = arith.constant 0.000000e+00 : f32
    %38 = vector.shape_cast %37 : vector<1x256xi1> to vector<1x256xi1>
    %39 = vector.broadcast %38 : vector<1x256xi1> to vector<8x256xi1>
    %40 = vector.broadcast %cst_20 : f32 to vector<8x256xf32>
    %41 = arith.select %39, %35, %40 : vector<8x256xi1>, vector<8x256xf32>
    %c0_21 = arith.constant 0 : index
    %c112 = arith.constant 112 : index
    %42 = vector.load %arg15[%c0_21, %c112] : memref<8x512xf32, #tpu.memory_space<vmem>>, vector<8x256xf32>
    %c0_22 = arith.constant 0 : index
    %c113 = arith.constant 113 : index
    %43 = vector.load %arg15[%c0_22, %c113] : memref<8x512xf32, #tpu.memory_space<vmem>>, vector<8x256xf32>
    %c14_i32 = arith.constant 14 : i32
    %44 = vector.broadcast %c14_i32 : i32 to vector<1x256xi32>
    %45 = arith.cmpi sle, %34, %44 : vector<1x256xi32>
    %cst_23 = arith.constant 0.000000e+00 : f32
    %46 = vector.shape_cast %45 : vector<1x256xi1> to vector<1x256xi1>
    %47 = vector.broadcast %46 : vector<1x256xi1> to vector<8x256xi1>
    %48 = vector.broadcast %cst_23 : f32 to vector<8x256xf32>
    %49 = arith.select %47, %43, %48 : vector<8x256xi1>, vector<8x256xf32>
    %c0_24 = arith.constant 0 : index
    %c127 = arith.constant 127 : index
    %50 = vector.load %arg15[%c0_24, %c127] : memref<8x512xf32, #tpu.memory_space<vmem>>, vector<8x256xf32>
    %c1_i32_25 = arith.constant 1 : i32
    %51 = vector.broadcast %c1_i32_25 : i32 to vector<1x256xi32>
    %52 = arith.cmpi sge, %34, %51 : vector<1x256xi32>
    %cst_26 = arith.constant 0.000000e+00 : f32
    %53 = vector.shape_cast %52 : vector<1x256xi1> to vector<1x256xi1>
    %54 = vector.broadcast %53 : vector<1x256xi1> to vector<8x256xi1>
    %55 = vector.broadcast %cst_26 : f32 to vector<8x256xf32>
    %56 = arith.select %54, %50, %55 : vector<8x256xi1>, vector<8x256xf32>
    %c0_27 = arith.constant 0 : index
    %c128_28 = arith.constant 128 : index
    %57 = vector.load %arg15[%c0_27, %c128_28] : memref<8x512xf32, #tpu.memory_space<vmem>>, vector<8x256xf32>
    %c0_29 = arith.constant 0 : index
    %c129 = arith.constant 129 : index
    %58 = vector.load %arg15[%c0_29, %c129] : memref<8x512xf32, #tpu.memory_space<vmem>>, vector<8x256xf32>
    %c14_i32_30 = arith.constant 14 : i32
    %59 = vector.broadcast %c14_i32_30 : i32 to vector<1x256xi32>
    %60 = arith.cmpi sle, %34, %59 : vector<1x256xi32>
    %cst_31 = arith.constant 0.000000e+00 : f32
    %61 = vector.shape_cast %60 : vector<1x256xi1> to vector<1x256xi1>
    %62 = vector.broadcast %61 : vector<1x256xi1> to vector<8x256xi1>
    %63 = vector.broadcast %cst_31 : f32 to vector<8x256xf32>
    %64 = arith.select %62, %58, %63 : vector<8x256xi1>, vector<8x256xf32>
    %c0_32 = arith.constant 0 : index
    %c143 = arith.constant 143 : index
    %65 = vector.load %arg15[%c0_32, %c143] : memref<8x512xf32, #tpu.memory_space<vmem>>, vector<8x256xf32>
    %c1_i32_33 = arith.constant 1 : i32
    %66 = vector.broadcast %c1_i32_33 : i32 to vector<1x256xi32>
    %67 = arith.cmpi sge, %34, %66 : vector<1x256xi32>
    %cst_34 = arith.constant 0.000000e+00 : f32
    %68 = vector.shape_cast %67 : vector<1x256xi1> to vector<1x256xi1>
    %69 = vector.broadcast %68 : vector<1x256xi1> to vector<8x256xi1>
    %70 = vector.broadcast %cst_34 : f32 to vector<8x256xf32>
    %71 = arith.select %69, %65, %70 : vector<8x256xi1>, vector<8x256xf32>
    %c0_35 = arith.constant 0 : index
    %c144 = arith.constant 144 : index
    %72 = vector.load %arg15[%c0_35, %c144] : memref<8x512xf32, #tpu.memory_space<vmem>>, vector<8x256xf32>
    %c0_36 = arith.constant 0 : index
    %c145 = arith.constant 145 : index
    %73 = vector.load %arg15[%c0_36, %c145] : memref<8x512xf32, #tpu.memory_space<vmem>>, vector<8x256xf32>
    %c14_i32_37 = arith.constant 14 : i32
    %74 = vector.broadcast %c14_i32_37 : i32 to vector<1x256xi32>
    %75 = arith.cmpi sle, %34, %74 : vector<1x256xi32>
    %cst_38 = arith.constant 0.000000e+00 : f32
    %76 = vector.shape_cast %75 : vector<1x256xi1> to vector<1x256xi1>
    %77 = vector.broadcast %76 : vector<1x256xi1> to vector<8x256xi1>
    %78 = vector.broadcast %cst_38 : f32 to vector<8x256xf32>
    %79 = arith.select %77, %73, %78 : vector<8x256xi1>, vector<8x256xf32>
    %80 = tpu.concatenate %41, %42, %49, %56, %57, %64, %71, %72, %79 in 0 : vector<8x256xf32>, vector<8x256xf32>, vector<8x256xf32>, vector<8x256xf32>, vector<8x256xf32>, vector<8x256xf32>, vector<8x256xf32>, vector<8x256xf32>, vector<8x256xf32> -> vector<72x256xf32>
    %81 = arith.truncf %80 : vector<72x256xf32> to vector<72x256xbf16>
    %c0_39 = arith.constant 0 : index
    %c0_40 = arith.constant 0 : index
    %82 = vector.load %arg5[%c0_39, %c0_40] : memref<8x72xbf16, #tpu.memory_space<vmem>>, vector<8x72xbf16>
    %cst_41 = arith.constant dense<0.000000e+00> : vector<8x256xf32>
    %83 = tpu.matmul %82, %81, %cst_41 {dimension_numbers = #tpu.dot_dimension_numbers<[1], [0], [0], [1], [0, 0, 1, 1], [], []>} : vector<8x72xbf16>, vector<72x256xbf16>, vector<8x256xf32> -> vector<8x256xf32>
    %c0_42 = arith.constant 0 : index
    %c0_43 = arith.constant 0 : index
    %84 = vector.load %arg6[%c0_42, %c0_43] : memref<8x1xf32, #tpu.memory_space<vmem>>, vector<8x1xf32>
    %85 = vector.broadcast %84 : vector<8x1xf32> to vector<8x256xf32>
    %86 = arith.mulf %83, %85 : vector<8x256xf32>
    %c0_44 = arith.constant 0 : index
    %c0_45 = arith.constant 0 : index
    %87 = vector.load %arg7[%c0_44, %c0_45] : memref<8x1xf32, #tpu.memory_space<vmem>>, vector<8x1xf32>
    %88 = vector.broadcast %87 : vector<8x1xf32> to vector<8x256xf32>
    %89 = arith.addf %86, %88 : vector<8x256xf32>
    %cst_46 = arith.constant 0.000000e+00 : f32
    %90 = vector.broadcast %cst_46 : f32 to vector<8x256xf32>
    %91 = arith.maximumf %89, %90 : vector<8x256xf32>
    %c0_47 = arith.constant 0 : index
    %c0_48 = arith.constant 0 : index
    %92 = vector.load %arg8[%c0_47, %c0_48] : memref<32x8xbf16, #tpu.memory_space<vmem>>, vector<32x8xbf16>
    %93 = arith.truncf %91 : vector<8x256xf32> to vector<8x256xbf16>
    %cst_49 = arith.constant dense<0.000000e+00> : vector<32x256xf32>
    %94 = tpu.matmul %92, %93, %cst_49 {dimension_numbers = #tpu.dot_dimension_numbers<[1], [0], [0], [1], [0, 0, 1, 1], [], []>} : vector<32x8xbf16>, vector<8x256xbf16>, vector<32x256xf32> -> vector<32x256xf32>
    %c0_50 = arith.constant 0 : index
    %c0_51 = arith.constant 0 : index
    %95 = vector.load %arg9[%c0_50, %c0_51] : memref<32x1xf32, #tpu.memory_space<vmem>>, vector<32x1xf32>
    %96 = vector.broadcast %95 : vector<32x1xf32> to vector<32x256xf32>
    %97 = arith.mulf %94, %96 : vector<32x256xf32>
    %c0_52 = arith.constant 0 : index
    %c0_53 = arith.constant 0 : index
    %98 = vector.load %arg10[%c0_52, %c0_53] : memref<32x1xf32, #tpu.memory_space<vmem>>, vector<32x1xf32>
    %99 = vector.broadcast %98 : vector<32x1xf32> to vector<32x256xf32>
    %100 = arith.addf %97, %99 : vector<32x256xf32>
    %c0_54 = arith.constant 0 : index
    %c0_55 = arith.constant 0 : index
    %101 = vector.load %arg11[%c0_54, %c0_55] : memref<32x8xbf16, #tpu.memory_space<vmem>>, vector<32x8xbf16>
    %102 = arith.truncf %1 : vector<8x256xf32> to vector<8x256xbf16>
    %cst_56 = arith.constant dense<0.000000e+00> : vector<32x256xf32>
    %103 = tpu.matmul %101, %102, %cst_56 {dimension_numbers = #tpu.dot_dimension_numbers<[1], [0], [0], [1], [0, 0, 1, 1], [], []>} : vector<32x8xbf16>, vector<8x256xbf16>, vector<32x256xf32> -> vector<32x256xf32>
    %c0_57 = arith.constant 0 : index
    %c0_58 = arith.constant 0 : index
    %104 = vector.load %arg12[%c0_57, %c0_58] : memref<32x1xf32, #tpu.memory_space<vmem>>, vector<32x1xf32>
    %105 = vector.broadcast %104 : vector<32x1xf32> to vector<32x256xf32>
    %106 = arith.mulf %103, %105 : vector<32x256xf32>
    %c0_59 = arith.constant 0 : index
    %c0_60 = arith.constant 0 : index
    %107 = vector.load %arg13[%c0_59, %c0_60] : memref<32x1xf32, #tpu.memory_space<vmem>>, vector<32x1xf32>
    %108 = vector.broadcast %107 : vector<32x1xf32> to vector<32x256xf32>
    %109 = arith.addf %106, %108 : vector<32x256xf32>
    %110 = arith.addf %100, %109 : vector<32x256xf32>
    %cst_61 = arith.constant 0.000000e+00 : f32
    %111 = vector.broadcast %cst_61 : f32 to vector<32x256xf32>
    %112 = arith.maximumf %110, %111 : vector<32x256xf32>
    %113 = vector.shape_cast %112 : vector<32x256xf32> to vector<1x32x256xf32>
    %c0_62 = arith.constant 0 : index
    %c0_63 = arith.constant 0 : index
    %c0_64 = arith.constant 0 : index
    %114 = vector.load %arg14[%c0_62, %c0_63, %c0_64] : memref<1x32x256xf32, #tpu.memory_space<vmem>>, vector<1x32x256xf32>
    tpu.vector_store %arg14[%c0_62, %c0_63, %c0_64], %113 {strides = array<i32>} : memref<1x32x256xf32, #tpu.memory_space<vmem>>, vector<1x32x256xf32>,
    return
  }
  func.func @transform_0(%arg0: i32) -> (i32, i32, i32) {
    %c0_i32 = arith.constant 0 : i32
    %c0_i32_0 = arith.constant 0 : i32
    %c0_i32_1 = arith.constant 0 : i32
    return %arg0, %c0_i32, %c0_i32_0 : i32, i32, i32
  }
  func.func @transform_1(%arg0: i32) -> (i32, i32) {
    %c0_i32 = arith.constant 0 : i32
    %c0_i32_0 = arith.constant 0 : i32
    %c0_i32_1 = arith.constant 0 : i32
    return %c0_i32, %c0_i32_0 : i32, i32
  }
  func.func @transform_2(%arg0: i32) -> (i32, i32) {
    %c0_i32 = arith.constant 0 : i32
    %c0_i32_0 = arith.constant 0 : i32
    %c0_i32_1 = arith.constant 0 : i32
    return %c0_i32, %c0_i32_0 : i32, i32
  }
  func.func @transform_3(%arg0: i32) -> (i32, i32) {
    %c0_i32 = arith.constant 0 : i32
    %c0_i32_0 = arith.constant 0 : i32
    %c0_i32_1 = arith.constant 0 : i32
    return %c0_i32, %c0_i32_0 : i32, i32
  }
  func.func @transform_4(%arg0: i32) -> (i32, i32) {
    %c0_i32 = arith.constant 0 : i32
    %c0_i32_0 = arith.constant 0 : i32
    %c0_i32_1 = arith.constant 0 : i32
    return %c0_i32, %c0_i32_0 : i32, i32
  }
  func.func @transform_5(%arg0: i32) -> (i32, i32) {
    %c0_i32 = arith.constant 0 : i32
    %c0_i32_0 = arith.constant 0 : i32
    %c0_i32_1 = arith.constant 0 : i32
    return %c0_i32, %c0_i32_0 : i32, i32
  }
  func.func @transform_6(%arg0: i32) -> (i32, i32) {
    %c0_i32 = arith.constant 0 : i32
    %c0_i32_0 = arith.constant 0 : i32
    %c0_i32_1 = arith.constant 0 : i32
    return %c0_i32, %c0_i32_0 : i32, i32
  }
  func.func @transform_7(%arg0: i32) -> (i32, i32) {
    %c0_i32 = arith.constant 0 : i32
    %c0_i32_0 = arith.constant 0 : i32
    %c0_i32_1 = arith.constant 0 : i32
    return %c0_i32, %c0_i32_0 : i32, i32
  }
  func.func @transform_8(%arg0: i32) -> (i32, i32) {
    %c0_i32 = arith.constant 0 : i32
    %c0_i32_0 = arith.constant 0 : i32
    %c0_i32_1 = arith.constant 0 : i32
    return %c0_i32, %c0_i32_0 : i32, i32
  }
  func.func @transform_9(%arg0: i32) -> (i32, i32) {
    %c0_i32 = arith.constant 0 : i32
    %c0_i32_0 = arith.constant 0 : i32
    %c0_i32_1 = arith.constant 0 : i32
    return %c0_i32, %c0_i32_0 : i32, i32
  }
  func.func @transform_10(%arg0: i32) -> (i32, i32) {
    %c0_i32 = arith.constant 0 : i32
    %c0_i32_0 = arith.constant 0 : i32
    %c0_i32_1 = arith.constant 0 : i32
    return %c0_i32, %c0_i32_0 : i32, i32
  }
  func.func @transform_11(%arg0: i32) -> (i32, i32) {
    %c0_i32 = arith.constant 0 : i32
    %c0_i32_0 = arith.constant 0 : i32
    %c0_i32_1 = arith.constant 0 : i32
    return %c0_i32, %c0_i32_0 : i32, i32
  }
  func.func @transform_12(%arg0: i32) -> (i32, i32) {
    %c0_i32 = arith.constant 0 : i32
    %c0_i32_0 = arith.constant 0 : i32
    %c0_i32_1 = arith.constant 0 : i32
    return %c0_i32, %c0_i32_0 : i32, i32
  }
  func.func @transform_13(%arg0: i32) -> (i32, i32, i32) {
    %c0_i32 = arith.constant 0 : i32
    %c0_i32_0 = arith.constant 0 : i32
    %c0_i32_1 = arith.constant 0 : i32
    return %arg0, %c0_i32, %c0_i32_0 : i32, i32, i32
  }
}

</mosaic_0001>

<llo_original>
// kernel: bottleneck_forward.1
$region0: #{bottleneck_forward.1}
  #allocation0 [shape = 'u32[]', space=smem, size = 0x4, offset = 0x4, fixed_abs, tag = 'smem constant byte address 0x4 - core index']
  #allocation1 [shape = 'u32[144,128]{1,0:T(1,128)}', space=vmem, size = 0x12000, scoped, tag = 'internal scratch']
  #allocation2 [shape = 'f32[8,512]{1,0:T(8,128)}', space=vmem, size = 0x4000, scoped, tag = 'scratch operand']
  %s0 = inlined_call_operand.vmem [shape: f32[2,8,256], index: 0, kind: input, shape index: {}]
  %s1 = inlined_call_operand.vmem [shape: bf16[8,8], index: 1, kind: input, shape index: {}]
  %s2 = inlined_call_operand.vmem [shape: f32[8,1], index: 2, kind: input, shape index: {}]
  %s3 = inlined_call_operand.vmem [shape: f32[8,1], index: 3, kind: input, shape index: {}]
  %s4 = inlined_call_operand.vmem [shape: bf16[8,72], index: 4, kind: input, shape index: {}]
  %s5 = inlined_call_operand.vmem [shape: f32[8,1], index: 5, kind: input, shape index: {}]
  %s6 = inlined_call_operand.vmem [shape: f32[8,1], index: 6, kind: input, shape index: {}]
  %s7 = inlined_call_operand.vmem [shape: bf16[32,8], index: 7, kind: input, shape index: {}]
  %s8 = inlined_call_operand.vmem [shape: f32[32,1], index: 8, kind: input, shape index: {}]
  %s9 = inlined_call_operand.vmem [shape: f32[32,1], index: 9, kind: input, shape index: {}]
  %s10 = inlined_call_operand.vmem [shape: bf16[32,8], index: 10, kind: input, shape index: {}]
  %s11 = inlined_call_operand.vmem [shape: f32[32,1], index: 11, kind: input, shape index: {}]
  %s12 = inlined_call_operand.vmem [shape: f32[32,1], index: 12, kind: input, shape index: {}]
  %s13 = inlined_call_operand.vmem [shape: f32[2,32,256], index: 13, kind: output, shape index: {}]
  %s14 = sld [smem:[#allocation0]]
  $region85: #{bottleneck_forward.1} parent=0
    _
  %s16 = ssub.s32 1, %s14
  %s17 = scalar_select 0, %s16, %s14
  loop: start=0, step=1, limit=4
  $region2: #{bottleneck_forward.1} parent=0 // loop_pre_header
    _
  $region3: #{bottleneck_forward.1} parent=0 // loop_header
    %s19 = sphi 0, %s23
    %p20 = scmp.ge.s32.totalorder %s19, 4
    %s29 = sphi 0, %s31
    %s32 = sphi 0, %s29
    %s33 = sphi 0, %s32
    %s49 = sphi 0, %s33
    %s53 = sphi 0, %s53
    %s55 = sphi 0, %s53
    %s56 = sphi 0, %s55
    %s70 = sphi 0, %s56
    %s74 = sphi 0, %s74
    %s76 = sphi 0, %s74
    %s77 = sphi 0, %s76
    %s91 = sphi 0, %s77
    %s95 = sphi 0, %s95
    %s97 = sphi 0, %s95
    %s98 = sphi 0, %s97
    %s112 = sphi 0, %s98
    %s116 = sphi 0, %s116
    %s118 = sphi 0, %s116
    %s119 = sphi 0, %s118
    %s133 = sphi 0, %s119
    %s137 = sphi 0, %s137
    %s139 = sphi 0, %s137
    %s140 = sphi 0, %s139
    %s154 = sphi 0, %s140
    %s158 = sphi 0, %s158
    %s160 = sphi 0, %s158
    %s161 = sphi 0, %s160
    %s175 = sphi 0, %s161
    %s179 = sphi 0, %s179
    %s181 = sphi 0, %s179
    %s182 = sphi 0, %s181
    %s196 = sphi 0, %s182
    %s200 = sphi 0, %s200
    %s202 = sphi 0, %s200
    %s203 = sphi 0, %s202
    %s217 = sphi 0, %s203
    %s221 = sphi 0, %s221
    %s223 = sphi 0, %s221
    %s224 = sphi 0, %s223
    %s238 = sphi 0, %s224
    %s242 = sphi 0, %s242
    %s244 = sphi 0, %s242
    %s245 = sphi 0, %s244
    %s259 = sphi 0, %s245
    %s263 = sphi 0, %s263
    %s265 = sphi 0, %s263
    %s266 = sphi 0, %s265
    %s280 = sphi 0, %s266
    %s284 = sphi 0, %s284
    %s286 = sphi 0, %s284
    %s287 = sphi 0, %s286
    %s301 = sphi 0, %s287
    %s307 = sphi 0, %s309
    %s310 = sphi 0, %s307
    %s311 = sphi 0, %s310
    %s327 = sphi 0, %s311
  $region4: #{bottleneck_forward.1} parent=0 // loop_header_branch
    %22 = sbr.rel (%p20) target = $region8
  $region5: #{bottleneck_forward.1} parent=0 // loop_body
    %s24 = ssub.s32 %s19, 1
    %s25 = ssub.s32 %s19, 2
    %s26 = sadd.s32 %s19, 1
    %s27 = ssub.s32 %s19, %s26
    %p28 = scmp.eq.s32.totalorder %s27, 0
    %s30 = sadd.s32 %s29, 1
    %s31 = scalar_select %p28, %s29, %s30
    %p34 = pneg %p28
    %p35 = scmp.eq.s32.totalorder %s19, 1
    %p36 = por %p34, %p35
    %p37 = scmp.ne.s32.totalorder %s29, %s32
    %p38 = scmp.eq.s32.totalorder %s19, 0
    %p39 = por %p37, %p38
    %p40 = scmp.ne.s32.totalorder %s29, %s32
    %p41 = scmp.eq.s32.totalorder %s24, 1
    %p42 = por %p40, %p41
    %p43 = scmp.ne.s32.totalorder %s32, %s33
    %p44 = scmp.eq.s32.totalorder %s24, 0
    %p45 = por %p43, %p44
    %p46 = scmp.ne.s32.totalorder %s32, %s33
    %p47 = scmp.eq.s32.totalorder %s25, 1
    %p48 = por %p46, %p47
    %p50 = scmp.ne.s32.totalorder %s33, %s49
    %p51 = scmp.eq.s32.totalorder %s25, 0
    %p52 = por %p50, %p51
    %s54 = sadd.s32 %s53, 1
    %p57 = scmp.eq.s32.totalorder %s19, 1
    %p58 = scmp.ne.s32.totalorder %s53, %s55
    %p59 = scmp.eq.s32.totalorder %s19, 0
    %p60 = por %p58, %p59
    %p61 = scmp.ne.s32.totalorder %s53, %s55
    %p62 = scmp.eq.s32.totalorder %s24, 1
    %p63 = por %p61, %p62
    %p64 = scmp.ne.s32.totalorder %s55, %s56
    %p65 = scmp.eq.s32.totalorder %s24, 0
    %p66 = por %p64, %p65
    %p67 = scmp.ne.s32.totalorder %s55, %s56
    %p68 = scmp.eq.s32.totalorder %s25, 1
    %p69 = por %p67, %p68
    %p71 = scmp.ne.s32.totalorder %s56, %s70
    %p72 = scmp.eq.s32.totalorder %s25, 0
    %p73 = por %p71, %p72
    %s75 = sadd.s32 %s74, 1
    %p78 = scmp.eq.s32.totalorder %s19, 1
    %p79 = scmp.ne.s32.totalorder %s74, %s76
    %p80 = scmp.eq.s32.totalorder %s19, 0
    %p81 = por %p79, %p80
    %p82 = scmp.ne.s32.totalorder %s74, %s76
    %p83 = scmp.eq.s32.totalorder %s24, 1
    %p84 = por %p82, %p83
    %p85 = scmp.ne.s32.totalorder %s76, %s77
    %p86 = scmp.eq.s32.totalorder %s24, 0
    %p87 = por %p85, %p86
    %p88 = scmp.ne.s32.totalorder %s76, %s77
    %p89 = scmp.eq.s32.totalorder %s25, 1
    %p90 = por %p88, %p89
    %p92 = scmp.ne.s32.totalorder %s77, %s91
    %p93 = scmp.eq.s32.totalorder %s25, 0
    %p94 = por %p92, %p93
    %s96 = sadd.s32 %s95, 1
    %p99 = scmp.eq.s32.totalorder %s19, 1
    %p100 = scmp.ne.s32.totalorder %s95, %s97
    %p101 = scmp.eq.s32.totalorder %s19, 0
    %p102 = por %p100, %p101
    %p103 = scmp.ne.s32.totalorder %s95, %s97
    %p104 = scmp.eq.s32.totalorder %s24, 1
    %p105 = por %p103, %p104
    %p106 = scmp.ne.s32.totalorder %s97, %s98
    %p107 = scmp.eq.s32.totalorder %s24, 0
    %p108 = por %p106, %p107
    %p109 = scmp.ne.s32.totalorder %s97, %s98
    %p110 = scmp.eq.s32.totalorder %s25, 1
    %p111 = por %p109, %p110
    %p113 = scmp.ne.s32.totalorder %s98, %s112
    %p114 = scmp.eq.s32.totalorder %s25, 0
    %p115 = por %p113, %p114
    %s117 = sadd.s32 %s116, 1
    %p120 = scmp.eq.s32.totalorder %s19, 1
    %p121 = scmp.ne.s32.totalorder %s116, %s118
    %p122 = scmp.eq.s32.totalorder %s19, 0
    %p123 = por %p121, %p122
    %p124 = scmp.ne.s32.totalorder %s116, %s118
    %p125 = scmp.eq.s32.totalorder %s24, 1
    %p126 = por %p124, %p125
    %p127 = scmp.ne.s32.totalorder %s118, %s119
    %p128 = scmp.eq.s32.totalorder %s24, 0
    %p129 = por %p127, %p128
    %p130 = scmp.ne.s32.totalorder %s118, %s119
    %p131 = scmp.eq.s32.totalorder %s25, 1
    %p132 = por %p130, %p131
    %p134 = scmp.ne.s32.totalorder %s119, %s133
    %p135 = scmp.eq.s32.totalorder %s25, 0
    %p136 = por %p134, %p135
    %s138 = sadd.s32 %s137, 1
    %p141 = scmp.eq.s32.totalorder %s19, 1
    %p142 = scmp.ne.s32.totalorder %s137, %s139
    %p143 = scmp.eq.s32.totalorder %s19, 0
    %p144 = por %p142, %p143
    %p145 = scmp.ne.s32.totalorder %s137, %s139
    %p146 = scmp.eq.s32.totalorder %s24, 1
    %p147 = por %p145, %p146
    %p148 = scmp.ne.s32.totalorder %s139, %s140
    %p149 = scmp.eq.s32.totalorder %s24, 0
    %p150 = por %p148, %p149
    %p151 = scmp.ne.s32.totalorder %s139, %s140
    %p152 = scmp.eq.s32.totalorder %s25, 1
    %p153 = por %p151, %p152
    %p155 = scmp.ne.s32.totalorder %s140, %s154
    %p156 = scmp.eq.s32.totalorder %s25, 0
    %p157 = por %p155, %p156
    %s159 = sadd.s32 %s158, 1
    %p162 = scmp.eq.s32.totalorder %s19, 1
    %p163 = scmp.ne.s32.totalorder %s158, %s160
    %p164 = scmp.eq.s32.totalorder %s19, 0
    %p165 = por %p163, %p164
    %p166 = scmp.ne.s32.totalorder %s158, %s160
    %p167 = scmp.eq.s32.totalorder %s24, 1
    %p168 = por %p166, %p167
    %p169 = scmp.ne.s32.totalorder %s160, %s161
    %p170 = scmp.eq.s32.totalorder %s24, 0
    %p171 = por %p169, %p170
    %p172 = scmp.ne.s32.totalorder %s160, %s161
    %p173 = scmp.eq.s32.totalorder %s25, 1
    %p174 = por %p172, %p173
    %p176 = scmp.ne.s32.totalorder %s161, %s175
    %p177 = scmp.eq.s32.totalorder %s25, 0
    %p178 = por %p176, %p177
    %s180 = sadd.s32 %s179, 1
    %p183 = scmp.eq.s32.totalorder %s19, 1
    %p184 = scmp.ne.s32.totalorder %s179, %s181
    %p185 = scmp.eq.s32.totalorder %s19, 0
    %p186 = por %p184, %p185
    %p187 = scmp.ne.s32.totalorder %s179, %s181
    %p188 = scmp.eq.s32.totalorder %s24, 1
    %p189 = por %p187, %p188
    %p190 = scmp.ne.s32.totalorder %s181, %s182
    %p191 = scmp.eq.s32.totalorder %s24, 0
    %p192 = por %p190, %p191
    %p193 = scmp.ne.s32.totalorder %s181, %s182
    %p194 = scmp.eq.s32.totalorder %s25, 1
    %p195 = por %p193, %p194
    %p197 = scmp.ne.s32.totalorder %s182, %s196
    %p198 = scmp.eq.s32.totalorder %s25, 0
    %p199 = por %p197, %p198
    %s201 = sadd.s32 %s200, 1
    %p204 = scmp.eq.s32.totalorder %s19, 1
    %p205 = scmp.ne.s32.totalorder %s200, %s202
    %p206 = scmp.eq.s32.totalorder %s19, 0
    %p207 = por %p205, %p206
    %p208 = scmp.ne.s32.totalorder %s200, %s202
    %p209 = scmp.eq.s32.totalorder %s24, 1
    %p210 = por %p208, %p209
    %p211 = scmp.ne.s32.totalorder %s202, %s203
    %p212 = scmp.eq.s32.totalorder %s24, 0
    %p213 = por %p211, %p212
    %p214 = scmp.ne.s32.totalorder %s202, %s203
    %p215 = scmp.eq.s32.totalorder %s25, 1
    %p216 = por %p214, %p215
    %p218 = scmp.ne.s32.totalorder %s203, %s217
    %p219 = scmp.eq.s32.totalorder %s25, 0
    %p220 = por %p218, %p219
    %s222 = sadd.s32 %s221, 1
    %p225 = scmp.eq.s32.totalorder %s19, 1
    %p226 = scmp.ne.s32.totalorder %s221, %s223
    %p227 = scmp.eq.s32.totalorder %s19, 0
    %p228 = por %p226, %p227
    %p229 = scmp.ne.s32.totalorder %s221, %s223
    %p230 = scmp.eq.s32.totalorder %s24, 1
    %p231 = por %p229, %p230
    %p232 = scmp.ne.s32.totalorder %s223, %s224
    %p233 = scmp.eq.s32.totalorder %s24, 0
    %p234 = por %p232, %p233
    %p235 = scmp.ne.s32.totalorder %s223, %s224
    %p236 = scmp.eq.s32.totalorder %s25, 1
    %p237 = por %p235, %p236
    %p239 = scmp.ne.s32.totalorder %s224, %s238
    %p240 = scmp.eq.s32.totalorder %s25, 0
    %p241 = por %p239, %p240
    %s243 = sadd.s32 %s242, 1
    %p246 = scmp.eq.s32.totalorder %s19, 1
    %p247 = scmp.ne.s32.totalorder %s242, %s244
    %p248 = scmp.eq.s32.totalorder %s19, 0
    %p249 = por %p247, %p248
    %p250 = scmp.ne.s32.totalorder %s242, %s244
    %p251 = scmp.eq.s32.totalorder %s24, 1
    %p252 = por %p250, %p251
    %p253 = scmp.ne.s32.totalorder %s244, %s245
    %p254 = scmp.eq.s32.totalorder %s24, 0
    %p255 = por %p253, %p254
    %p256 = scmp.ne.s32.totalorder %s244, %s245
    %p257 = scmp.eq.s32.totalorder %s25, 1
    %p258 = por %p256, %p257
    %p260 = scmp.ne.s32.totalorder %s245, %s259
    %p261 = scmp.eq.s32.totalorder %s25, 0
    %p262 = por %p260, %p261
    %s264 = sadd.s32 %s263, 1
    %p267 = scmp.eq.s32.totalorder %s19, 1
    %p268 = scmp.ne.s32.totalorder %s263, %s265
    %p269 = scmp.eq.s32.totalorder %s19, 0
    %p270 = por %p268, %p269
    %p271 = scmp.ne.s32.totalorder %s263, %s265
    %p272 = scmp.eq.s32.totalorder %s24, 1
    %p273 = por %p271, %p272
    %p274 = scmp.ne.s32.totalorder %s265, %s266
    %p275 = scmp.eq.s32.totalorder %s24, 0
    %p276 = por %p274, %p275
    %p277 = scmp.ne.s32.totalorder %s265, %s266
    %p278 = scmp.eq.s32.totalorder %s25, 1
    %p279 = por %p277, %p278
    %p281 = scmp.ne.s32.totalorder %s266, %s280
    %p282 = scmp.eq.s32.totalorder %s25, 0
    %p283 = por %p281, %p282
    %s285 = sadd.s32 %s284, 1
    %p288 = scmp.eq.s32.totalorder %s19, 1
    %p289 = scmp.ne.s32.totalorder %s284, %s286
    %p290 = scmp.eq.s32.totalorder %s19, 0
    %p291 = por %p289, %p290
    %p292 = scmp.ne.s32.totalorder %s284, %s286
    %p293 = scmp.eq.s32.totalorder %s24, 1
    %p294 = por %p292, %p293
    %p295 = scmp.ne.s32.totalorder %s286, %s287
    %p296 = scmp.eq.s32.totalorder %s24, 0
    %p297 = por %p295, %p296
    %p298 = scmp.ne.s32.totalorder %s286, %s287
    %p299 = scmp.eq.s32.totalorder %s25, 1
    %p300 = por %p298, %p299
    %p302 = scmp.ne.s32.totalorder %s287, %s301
    %p303 = scmp.eq.s32.totalorder %s25, 0
    %p304 = por %p302, %p303
    %s305 = ssub.s32 %s19, %s26
    %p306 = scmp.eq.s32.totalorder %s305, 0
    %s308 = sadd.s32 %s307, 1
    %s309 = scalar_select %p306, %s307, %s308
    %p312 = pneg %p306
    %p313 = scmp.eq.s32.totalorder %s19, 1
    %p314 = por %p312, %p313
    %p315 = scmp.ne.s32.totalorder %s307, %s310
    %p316 = scmp.eq.s32.totalorder %s19, 0
    %p317 = por %p315, %p316
    %p318 = scmp.ne.s32.totalorder %s307, %s310
    %p319 = scmp.eq.s32.totalorder %s24, 1
    %p320 = por %p318, %p319
    %p321 = scmp.ne.s32.totalorder %s310, %s311
    %p322 = scmp.eq.s32.totalorder %s24, 0
    %p323 = por %p321, %p322
    %p324 = scmp.ne.s32.totalorder %s310, %s311
    %p325 = scmp.eq.s32.totalorder %s25, 1
    %p326 = por %p324, %p325
    %p328 = scmp.ne.s32.totalorder %s311, %s327
    %p329 = scmp.eq.s32.totalorder %s25, 0
    %p330 = por %p328, %p329
    %p331 = scmp.le.s32.totalorder 1, %s19
    %p332 = scmp.lt.s32.totalorder %s19, 3
    %p333 = pnand %p331, %p332
    %p334 = pneg %p333
    // Predicated region
    $region9: #{bottleneck_forward.1} parent=5 // pred_check
      _
    $region10: #{bottleneck_forward.1} parent=5 // pred_check_branch
      %336 = sbr.rel (%p333) target = $region12
    $region11: #{bottleneck_forward.1} parent=5 // pred_region
      %s337 = ssub.s32 %s19, 1
      // Predicated region
      $region13: #{bottleneck_forward.1} parent=11 // pred_check
        %p338 = pneg %p66
      $region14: #{bottleneck_forward.1} parent=11 // pred_check_branch
        %340 = sbr.rel (%p338) target = $region16
      $region15: #{bottleneck_forward.1} parent=11 // pred_region
        _
      $region16: #{bottleneck_forward.1} parent=11 // pred_fallthru
        _
      // Predicated region
      $region17: #{bottleneck_forward.1} parent=11 // pred_check
        %p341 = pneg %p87
      $region18: #{bottleneck_forward.1} parent=11 // pred_check_branch
        %343 = sbr.rel (%p341) target = $region20
      $region19: #{bottleneck_forward.1} parent=11 // pred_region
        _
      $region20: #{bottleneck_forward.1} parent=11 // pred_fallthru
        _
      // Predicated region
      $region21: #{bottleneck_forward.1} parent=11 // pred_check
        %p344 = pneg %p108
      $region22: #{bottleneck_forward.1} parent=11 // pred_check_branch
        %346 = sbr.rel (%p344) target = $region24
      $region23: #{bottleneck_forward.1} parent=11 // pred_region
        _
      $region24: #{bottleneck_forward.1} parent=11 // pred_fallthru
        _
      // Predicated region
      $region25: #{bottleneck_forward.1} parent=11 // pred_check
        %p347 = pneg %p129
      $region26: #{bottleneck_forward.1} parent=11 // pred_check_branch
        %349 = sbr.rel (%p347) target = $region28
      $region27: #{bottleneck_forward.1} parent=11 // pred_region
        _
      $region28: #{bottleneck_forward.1} parent=11 // pred_fallthru
        _
      // Predicated region
      $region29: #{bottleneck_forward.1} parent=11 // pred_check
        %p350 = pneg %p150
      $region30: #{bottleneck_forward.1} parent=11 // pred_check_branch
        %352 = sbr.rel (%p350) target = $region32
      $region31: #{bottleneck_forward.1} parent=11 // pred_region
        _
      $region32: #{bottleneck_forward.1} parent=11 // pred_fallthru
        _
      // Predicated region
      $region33: #{bottleneck_forward.1} parent=11 // pred_check
        %p353 = pneg %p171
      $region34: #{bottleneck_forward.1} parent=11 // pred_check_branch
        %355 = sbr.rel (%p353) target = $region36
      $region35: #{bottleneck_forward.1} parent=11 // pred_region
        _
      $region36: #{bottleneck_forward.1} parent=11 // pred_fallthru
        _
      // Predicated region
      $region37: #{bottleneck_forward.1} parent=11 // pred_check
        %p356 = pneg %p192
      $region38: #{bottleneck_forward.1} parent=11 // pred_check_branch
        %358 = sbr.rel (%p356) target = $region40
      $region39: #{bottleneck_forward.1} parent=11 // pred_region
        _
      $region40: #{bottleneck_forward.1} parent=11 // pred_fallthru
        _
      // Predicated region
      $region41: #{bottleneck_forward.1} parent=11 // pred_check
        %p359 = pneg %p213
      $region42: #{bottleneck_forward.1} parent=11 // pred_check_branch
        %361 = sbr.rel (%p359) target = $region44
      $region43: #{bottleneck_forward.1} parent=11 // pred_region
        _
      $region44: #{bottleneck_forward.1} parent=11 // pred_fallthru
        _
      // Predicated region
      $region45: #{bottleneck_forward.1} parent=11 // pred_check
        %p362 = pneg %p234
      $region46: #{bottleneck_forward.1} parent=11 // pred_check_branch
        %364 = sbr.rel (%p362) target = $region48
      $region47: #{bottleneck_forward.1} parent=11 // pred_region
        _
      $region48: #{bottleneck_forward.1} parent=11 // pred_fallthru
        _
      // Predicated region
      $region49: #{bottleneck_forward.1} parent=11 // pred_check
        %p365 = pneg %p255
      $region50: #{bottleneck_forward.1} parent=11 // pred_check_branch
        %367 = sbr.rel (%p365) target = $region52
      $region51: #{bottleneck_forward.1} parent=11 // pred_region
        _
      $region52: #{bottleneck_forward.1} parent=11 // pred_fallthru
        _
      // Predicated region
      $region53: #{bottleneck_forward.1} parent=11 // pred_check
        %p368 = pneg %p276
      $region54: #{bottleneck_forward.1} parent=11 // pred_check_branch
        %370 = sbr.rel (%p368) target = $region56
      $region55: #{bottleneck_forward.1} parent=11 // pred_region
        _
      $region56: #{bottleneck_forward.1} parent=11 // pred_fallthru
        _
      // Predicated region
      $region57: #{bottleneck_forward.1} parent=11 // pred_check
        %p371 = pneg %p297
      $region58: #{bottleneck_forward.1} parent=11 // pred_check_branch
        %373 = sbr.rel (%p371) target = $region60
      $region59: #{bottleneck_forward.1} parent=11 // pred_region
        _
      $region60: #{bottleneck_forward.1} parent=11 // pred_fallthru
        _
    $region12: #{bottleneck_forward.1} parent=5 // pred_fallthru
      _
    %p374 = scmp.lt.s32.totalorder %s19, 2
    // Predicated region
    $region61: #{bottleneck_forward.1} parent=5 // pred_check
      %p375 = pneg %p374
    $region62: #{bottleneck_forward.1} parent=5 // pred_check_branch
      %377 = sbr.rel (%p375) target = $region64
    $region63: #{bottleneck_forward.1} parent=5 // pred_region
      // Predicated region
      $region65: #{bottleneck_forward.1} parent=63 // pred_check
        %p378 = pneg %p39
      $region66: #{bottleneck_forward.1} parent=63 // pred_check_branch
        %380 = sbr.rel (%p378) target = $region68
      $region67: #{bottleneck_forward.1} parent=63 // pred_region
        %p381 = scmp.lt.s32.totalorder %s19, 1
        %s382 = scalar_select %p381, %s19, 1
        %s383 = smul.addr %s382, 2
        %s384 = smul.addr %s383, 8
        %s385 = scalar_lea.vmem %s0, %s384
      $region68: #{bottleneck_forward.1} parent=63 // pred_fallthru
        _
    $region64: #{bottleneck_forward.1} parent=5 // pred_fallthru
      _
    %p386 = scmp.le.s32.totalorder 1, %s19
    %p387 = scmp.lt.s32.totalorder %s19, 3
    %p388 = pnand %p386, %p387
    %p389 = pneg %p388
    // Predicated region
    $region69: #{bottleneck_forward.1} parent=5 // pred_check
      _
    $region70: #{bottleneck_forward.1} parent=5 // pred_check_branch
      %391 = sbr.rel (%p388) target = $region72
    $region71: #{bottleneck_forward.1} parent=5 // pred_region
      %s392 = ssub.s32 %s19, 1
      %p393 = scmp.lt.s32.totalorder %s24, 1
      %s394 = scalar_select %p393, %s24, 1
      %s395 = smul.addr %s394, 2
      %s396 = smul.addr %s395, 8
      %s397 = scalar_lea.vmem %s0, %s396
      %p398 = pneg %p45
      %p399 = pneg %p42
      %p400 = pneg %p66
      %p401 = pneg %p63
      %p402 = pneg %p87
      %p403 = pneg %p84
      %p404 = pneg %p108
      %p405 = pneg %p105
      %p406 = pneg %p129
      %p407 = pneg %p126
      %p408 = pneg %p150
      %p409 = pneg %p147
      %p410 = pneg %p171
      %p411 = pneg %p168
      %p412 = pneg %p192
      %p413 = pneg %p189
      %p414 = pneg %p213
      %p415 = pneg %p210
      %p416 = pneg %p234
      %p417 = pneg %p231
      %p418 = pneg %p255
      %p419 = pneg %p252
      %p420 = pneg %p276
      %p421 = pneg %p273
      %p422 = pneg %p297
      %p423 = pneg %p294
      %p424 = pneg %p323
      %p425 = pneg %p320
      %p426 = scmp.lt.s32.totalorder %s24, 1
      %s427 = scalar_select %p426, %s24, 1
      %s428 = smul.addr %s427, 8
      %s429 = smul.addr %s428, 8
      %s430 = scalar_lea.vmem %s13, %s429
      %p431 = scmp.lt.s32.totalorder %s24, 1
      %s432 = scalar_select %p431, %s24, 1
      %s433 = smul.addr %s432, 2
      %s434 = smul.addr %s433, 8
      %s435 = scalar_lea.vmem %s0, %s434
      %p436 = scmp.lt.s32.totalorder %s24, 1
      %s437 = scalar_select %p436, %s24, 1
      %s438 = smul.addr %s437, 8
      %s439 = smul.addr %s438, 8
      %s440 = scalar_lea.vmem %s13, %s439
      %v442 = vld [vmem:[%s435] sm:$0xff]
      %v443 = vld [vmem:[%s435 + $0x8] sm:$0xff]
      %v444 = vld [vmem:[%s1] sm:$0xf]
      %v445 = vpack.c.bf16 %v442, %v442
      %v446 = vpack.c.bf16 %v443, %v443
      %vm447 = vcmask 64512
      %v449 = vsel %vm447, %v444, 0
      %vm451 = vcmask 1043456
      %v453 = vsel %vm451, %v445, 0
      %v456 = vsel %vm451, %v446, 0
      %458 = vmatprep.subr.bf16.mxu0 %v456
      %459 = vmatpush1.bf16.msra.mxu0 %v453
      %460 = vmatprep.subr.bf16.mxu0 0
      %461 = vmatpush1.bf16.msra.mxu0 0
      %462 = vmatprep.subr.bf16.mxu0 0
      %463 = vmatpush1.bf16.msra.mxu0 0
      %464 = vmatprep.subr.bf16.mxu0 0
      %465 = vmatpush1.bf16.msra.mxu0 0
      %466 = vmatprep.subr.bf16.mxu0 0
      %467 = vmatpush1.bf16.msra.mxu0 0
      %468 = vmatprep.subr.bf16.mxu0 0
      %469 = vmatpush1.bf16.msra.mxu0 0
      %470 = vmatprep.subr.bf16.mxu0 0
      %471 = vmatpush1.bf16.msra.mxu0 0
      %472 = vmatprep.subr.bf16.mxu0 0
      %473 = vmatpush1.bf16.msra.mxu0 0
      %474 = vmatprep.subr.bf16.mxu0 0
      %475 = vmatpush1.bf16.msra.mxu0 0
      %476 = vmatprep.subr.bf16.mxu0 0
      %477 = vmatpush1.bf16.msra.mxu0 0
      %478 = vmatprep.subr.bf16.mxu0 0
      %479 = vmatpush1.bf16.msra.mxu0 0
      %480 = vmatprep.subr.bf16.mxu0 0
      %481 = vmatpush1.bf16.msra.mxu0 0
      %482 = vmatprep.subr.bf16.mxu0 0
      %483 = vmatpush1.bf16.msra.mxu0 0
      %484 = vmatprep.subr.bf16.mxu0 0
      %485 = vmatpush1.bf16.msra.mxu0 0
      %486 = vmatprep.subr.bf16.mxu0 0
      %487 = vmatpush1.bf16.msra.mxu0 0
      %488 = vmatprep.subr.bf16.mxu0 0
      %489 = vmatpush1.bf16.msra.mxu0 0
      %490 = vmatprep.mubr.bf16.mxu0 0
      %491 = vmatmul.mubr.bf16.gmra.mrb[0].mxu0 %v449
      %v492 = vpop.f32.mrb[0].mxu0
      %v493 = vadd.f32 0.0, %v492
      %v494 = vpop.f32.mrb[0].mxu0
      %v495 = vadd.f32 0.0, %v494
      %v496 = vpop.f32.mrb[0].mxu0
      %v497 = vpop.f32.mrb[0].mxu0
      %498 = vdwg.mxu0
      %v499 = vld [vmem:[%s2] sm:$0xff]
      %501 = vset.pattern.permute.xlu0 0
      %502 = vperm.xlu0 %501, %v499
      %v503 = vpop.permute.xlu0 %502
      %v505 = vmul.f32 %v493, %v503
      %v506 = vmul.f32 %v495, %v503
      %v507 = vld [vmem:[%s3] sm:$0xff]
      %509 = vset.pattern.permute.xlu0 0
      %510 = vperm.xlu0 %509, %v507
      %v511 = vpop.permute.xlu0 %510
      %v513 = vadd.f32 %v505, %v511
      %v514 = vadd.f32 %v506, %v511
      %v515 = vmax.f32 %v513, 0.0
      %v516 = vmax.f32 %v514, 0.0
      %517 = vst [vmem:[#allocation2] sm:$0xff] 0.0
      %518 = vst [vmem:[#allocation2 + $0x18] sm:$0xff] 0.0
      %519 = vst [vmem:[#allocation2 + $0x8] sm:$0xff] %v515
      %520 = vst [vmem:[#allocation2 + $0x10] sm:$0xff] %v516
      %v521 = vlaneseq
      %v522 = vand.u32 %v521, 127
      %v523 = vadd.s32 %v522, 128
      %vm524 = vcmp.lt.s32.totalorder %v522, 0
      %v525 = vsub.s32 0, %v522
      %v526 = vsel %vm524, %v525, %v522
      %v527 = vshrl.u32 %v526, 4
      %v528 = vand.u32 %v526, 15
      %v529 = vsub.s32 0, %v528
      %v530 = vsel %vm524, %v529, %v528
      %vm531 = vcmp.lt.s32.totalorder %v523, 0
      %v532 = vsub.s32 0, %v523
      %v533 = vsel %vm531, %v532, %v523
      %v534 = vshrl.u32 %v533, 4
      %v535 = vand.u32 %v533, 15
      %v536 = vsub.s32 0, %v535
      %v537 = vsel %vm531, %v536, %v535
      %vm538 = vcmp.ne.s32.totalorder %v530, 0
      %vm539 = vcmp.ne.s32.totalorder %v537, 0
      %vm540 = vcmp.lt.s32.totalorder %v530, 0
      %vm541 = vcmp.lt.s32.totalorder %v537, 0
      %vm542 = vmand %vm540, %vm538
      %vm543 = vmand %vm541, %vm539
      %v544 = vadd.s32 %v530, 16
      %v545 = vadd.s32 %v537, 16
      %v546 = vsel %vm542, %v544, %v530
      %v547 = vsel %vm543, %v545, %v537
      %v548 = vld [vmem:[#allocation2] sm:$0xff]
      %v549 = vld [vmem:[#allocation2 + $0x8] sm:$0xff]
      %v550 = vld [vmem:[#allocation2 + $0x10] sm:$0xff]
      %vm551 = vcmp.ge.s32.totalorder %v546, 1
      %vm552 = vcmp.ge.s32.totalorder %v547, 1
      %v553 = vsel %vm551, 1, 0
      %v554 = vsel %vm552, 1, 0
      %vm555 = vcmp.eq.s32.totalorder %v553, 1
      %vm556 = vcmp.eq.s32.totalorder %v554, 1
      %560 = vrot.lane.b32.xlu0 %v548, 17
      %v561 = vpop.permute.xlu0 %560
      %562 = vrot.lane.b32.xlu0 %v549, 17
      %v563 = vpop.permute.xlu0 %562
      %564 = vrot.lane.b32.xlu0 %v550, 17
      %v565 = vpop.permute.xlu0 %564
      %vm566 = vcmask 138240
      %v567 = vsel %vm566, %v561, %v563
      %v568 = vsel %vm566, %v563, %v565
      %v571 = vsel %vm555, %v567, 0.0
      %v572 = vsel %vm556, %v568, 0.0
      %vm573 = vcmp.le.s32.totalorder %v546, 14
      %vm574 = vcmp.le.s32.totalorder %v547, 14
      %v575 = vsel %vm573, 1, 0
      %v576 = vsel %vm574, 1, 0
      %vm577 = vcmp.eq.s32.totalorder %v575, 1
      %vm578 = vcmp.eq.s32.totalorder %v576, 1
      %579 = vrot.lane.b32.xlu0 %v548, 15
      %v580 = vpop.permute.xlu0 %579
      %581 = vrot.lane.b32.xlu0 %v549, 15
      %v582 = vpop.permute.xlu0 %581
      %583 = vrot.lane.b32.xlu0 %v550, 15
      %v584 = vpop.permute.xlu0 %583
      %vm585 = vcmask 121856
      %v586 = vsel %vm585, %v580, %v582
      %v587 = vsel %vm585, %v582, %v584
      %v590 = vsel %vm577, %v586, 0.0
      %v591 = vsel %vm578, %v587, 0.0
      %592 = vrot.lane.b32.xlu0 %v548, 1
      %v593 = vpop.permute.xlu0 %592
      %594 = vrot.lane.b32.xlu0 %v549, 1
      %v595 = vpop.permute.xlu0 %594
      %596 = vrot.lane.b32.xlu0 %v550, 1
      %v597 = vpop.permute.xlu0 %596
      %vm598 = vcmask 7168
      %v599 = vsel %vm598, %v593, %v595
      %v600 = vsel %vm598, %v595, %v597
      %v603 = vsel %vm555, %v599, 0.0
      %v604 = vsel %vm556, %v600, 0.0
      %v605 = vld [vmem:[#allocation2 + $0x8] sm:$0xff]
      %v606 = vld [vmem:[#allocation2 + $0x10] sm:$0xff]
      %v607 = vld [vmem:[#allocation2 + $0x18] sm:$0xff]
      %611 = vrot.lane.b32.xlu0 %v605, 127
      %v612 = vpop.permute.xlu0 %611
      %613 = vrot.lane.b32.xlu0 %v606, 127
      %v614 = vpop.permute.xlu0 %613
      %615 = vrot.lane.b32.xlu0 %v607, 127
      %v616 = vpop.permute.xlu0 %615
      %vm617 = vcmask 1039360
      %v618 = vsel %vm617, %v612, %v614
      %v619 = vsel %vm617, %v614, %v616
      %v622 = vsel %vm577, %v618, 0.0
      %v623 = vsel %vm578, %v619, 0.0
      %624 = vrot.lane.b32.xlu0 %v605, 113
      %v625 = vpop.permute.xlu0 %624
      %626 = vrot.lane.b32.xlu0 %v606, 113
      %v627 = vpop.permute.xlu0 %626
      %628 = vrot.lane.b32.xlu0 %v607, 113
      %v629 = vpop.permute.xlu0 %628
      %vm630 = vcmask 924672
      %v631 = vsel %vm630, %v625, %v627
      %v632 = vsel %vm630, %v627, %v629
      %v635 = vsel %vm555, %v631, 0.0
      %v636 = vsel %vm556, %v632, 0.0
      %637 = vrot.lane.b32.xlu0 %v605, 111
      %v638 = vpop.permute.xlu0 %637
      %639 = vrot.lane.b32.xlu0 %v606, 111
      %v640 = vpop.permute.xlu0 %639
      %641 = vrot.lane.b32.xlu0 %v607, 111
      %v642 = vpop.permute.xlu0 %641
      %vm643 = vcmask 908288
      %v644 = vsel %vm643, %v638, %v640
      %v645 = vsel %vm643, %v640, %v642
      %v648 = vsel %vm577, %v644, 0.0
      %v649 = vsel %vm578, %v645, 0.0
      %650 = vrot.lane.b32.xlu0 %v548, 16
      %v651 = vpop.permute.xlu0 %650
      %652 = vrot.lane.b32.xlu0 %v549, 16
      %v653 = vpop.permute.xlu0 %652
      %654 = vrot.lane.b32.xlu0 %v550, 16
      %v655 = vpop.permute.xlu0 %654
      %vm656 = vcmask 130048
      %v657 = vsel %vm656, %v651, %v653
      %v658 = vsel %vm656, %v653, %v655
      %661 = vrot.lane.b32.xlu0 %v605, 112
      %v662 = vpop.permute.xlu0 %661
      %663 = vrot.lane.b32.xlu0 %v606, 112
      %v664 = vpop.permute.xlu0 %663
      %665 = vrot.lane.b32.xlu0 %v607, 112
      %v666 = vpop.permute.xlu0 %665
      %vm667 = vcmask 916480
      %v668 = vsel %vm667, %v662, %v664
      %v669 = vsel %vm667, %v664, %v666
      %v672 = vpack.c.bf16 %v657, %v571
      %v673 = vpack.c.bf16 %v658, %v572
      %v674 = vpack.c.bf16 %v603, %v590
      %v675 = vpack.c.bf16 %v604, %v591
      %v676 = vpack.c.bf16 %v622, %v549
      %v677 = vpack.c.bf16 %v623, %v550
      %v678 = vpack.c.bf16 %v668, %v635
      %v679 = vpack.c.bf16 %v669, %v636
      %v680 = vpack.c.bf16 %v648, %v648
      %v681 = vpack.c.bf16 %v649, %v649
      %v682 = vld [vmem:[%s4] sm:$0xf]
      %vm683 = vcmask 588800
      %v685 = vsel %vm683, %v682, 0
      %v688 = vsel %vm451, %v680, 0
      %v691 = vsel %vm451, %v681, 0
      %693 = vmatprep.subr.bf16.mxu0 %v673
      %694 = vmatpush1.bf16.msra.mxu0 %v672
      %695 = vmatprep.subr.bf16.mxu0 %v675
      %696 = vmatpush1.bf16.msra.mxu0 %v674
      %697 = vmatprep.subr.bf16.mxu0 %v677
      %698 = vmatpush1.bf16.msra.mxu0 %v676
      %699 = vmatprep.subr.bf16.mxu0 %v679
      %700 = vmatpush1.bf16.msra.mxu0 %v678
      %701 = vmatprep.subr.bf16.mxu0 %v691
      %702 = vmatpush1.bf16.msra.mxu0 %v688
      %703 = vmatprep.subr.bf16.mxu0 0
      %704 = vmatpush1.bf16.msra.mxu0 0
      %705 = vmatprep.subr.bf16.mxu0 0
      %706 = vmatpush1.bf16.msra.mxu0 0
      %707 = vmatprep.subr.bf16.mxu0 0
      %708 = vmatpush1.bf16.msra.mxu0 0
      %709 = vmatprep.subr.bf16.mxu0 0
      %710 = vmatpush1.bf16.msra.mxu0 0
      %711 = vmatprep.subr.bf16.mxu0 0
      %712 = vmatpush1.bf16.msra.mxu0 0
      %713 = vmatprep.subr.bf16.mxu0 0
      %714 = vmatpush1.bf16.msra.mxu0 0
      %715 = vmatprep.subr.bf16.mxu0 0
      %716 = vmatpush1.bf16.msra.mxu0 0
      %717 = vmatprep.subr.bf16.mxu0 0
      %718 = vmatpush1.bf16.msra.mxu0 0
      %719 = vmatprep.subr.bf16.mxu0 0
      %720 = vmatpush1.bf16.msra.mxu0 0
      %721 = vmatprep.subr.bf16.mxu0 0
      %722 = vmatpush1.bf16.msra.mxu0 0
      %723 = vmatprep.subr.bf16.mxu0 0
      %724 = vmatpush1.bf16.msra.mxu0 0
      %725 = vmatprep.mubr.bf16.mxu0 0
      %726 = vmatmul.mubr.bf16.gmra.mrb[0].mxu0 %v685
      %v727 = vpop.f32.mrb[0].mxu0
      %v728 = vadd.f32 0.0, %v727
      %v729 = vpop.f32.mrb[0].mxu0
      %v730 = vadd.f32 0.0, %v729
      %v731 = vpop.f32.mrb[0].mxu0
      %v732 = vpop.f32.mrb[0].mxu0
      %733 = vdwg.mxu0
      %v734 = vld [vmem:[%s5] sm:$0xff]
      %736 = vset.pattern.permute.xlu0 0
      %737 = vperm.xlu0 %736, %v734
      %v738 = vpop.permute.xlu0 %737
      %v740 = vmul.f32 %v728, %v738
      %v741 = vmul.f32 %v730, %v738
      %v742 = vld [vmem:[%s6] sm:$0xff]
      %744 = vset.pattern.permute.xlu0 0
      %745 = vperm.xlu0 %744, %v742
      %v746 = vpop.permute.xlu0 %745
      %v748 = vadd.f32 %v740, %v746
      %v749 = vadd.f32 %v741, %v746
      %v750 = vmax.f32 %v748, 0.0
      %v751 = vmax.f32 %v749, 0.0
      %v752 = vld [vmem:[%s7] sm:$0xf]
      %v753 = vld [vmem:[%s7 + $0x4] sm:$0xf]
      %v754 = vld [vmem:[%s7 + $0x8] sm:$0xf]
      %v755 = vld [vmem:[%s7 + $0xc] sm:$0xf]
      %v756 = vpack.c.bf16 %v750, %v750
      %v757 = vpack.c.bf16 %v751, %v751
      %v762 = vunpack.c.l.b16 %v752
      %v763 = vunpack.c.l.b16 %v753
      %v764 = vunpack.c.l.b16 %v754
      %v765 = vunpack.c.l.b16 %v755
      %v766 = vpack.c.b16 %v763, %v762
      %v767 = vpack.c.b16 %v765, %v764
      %v769 = vsel %vm447, %v766, 0
      %v772 = vsel %vm447, %v767, 0
      %v775 = vsel %vm451, %v756, 0
      %v778 = vsel %vm451, %v757, 0
      %780 = vmatprep.subr.bf16.mxu0 %v778
      %781 = vmatpush1.bf16.msra.mxu0 %v775
      %782 = vmatprep.subr.bf16.mxu0 0
      %783 = vmatpush1.bf16.msra.mxu0 0
      %784 = vmatprep.subr.bf16.mxu0 0
      %785 = vmatpush1.bf16.msra.mxu0 0
      %786 = vmatprep.subr.bf16.mxu0 0
      %787 = vmatpush1.bf16.msra.mxu0 0
      %788 = vmatprep.subr.bf16.mxu0 0
      %789 = vmatpush1.bf16.msra.mxu0 0
      %790 = vmatprep.subr.bf16.mxu0 0
      %791 = vmatpush1.bf16.msra.mxu0 0
      %792 = vmatprep.subr.bf16.mxu0 0
      %793 = vmatpush1.bf16.msra.mxu0 0
      %794 = vmatprep.subr.bf16.mxu0 0
      %795 = vmatpush1.bf16.msra.mxu0 0
      %796 = vmatprep.subr.bf16.mxu0 0
      %797 = vmatpush1.bf16.msra.mxu0 0
      %798 = vmatprep.subr.bf16.mxu0 0
      %799 = vmatpush1.bf16.msra.mxu0 0
      %800 = vmatprep.subr.bf16.mxu0 0
      %801 = vmatpush1.bf16.msra.mxu0 0
      %802 = vmatprep.subr.bf16.mxu0 0
      %803 = vmatpush1.bf16.msra.mxu0 0
      %804 = vmatprep.subr.bf16.mxu0 0
      %805 = vmatpush1.bf16.msra.mxu0 0
      %806 = vmatprep.subr.bf16.mxu0 0
      %807 = vmatpush1.bf16.msra.mxu0 0
      %808 = vmatprep.subr.bf16.mxu0 0
      %809 = vmatpush1.bf16.msra.mxu0 0
      %810 = vmatprep.subr.bf16.mxu0 0
      %811 = vmatpush1.bf16.msra.mxu0 0
      %812 = vmatprep.mubr.bf16.mxu0 0
      %813 = vmatmul.mubr.bf16.gmra.mrb[0].mxu0 %v769
      %v814 = vpop.f32.mrb[0].mxu0
      %v815 = vadd.f32 0.0, %v814
      %v816 = vpop.f32.mrb[0].mxu0
      %v817 = vadd.f32 0.0, %v816
      %v818 = vpop.f32.mrb[0].mxu0
      %v819 = vadd.f32 0.0, %v818
      %v820 = vpop.f32.mrb[0].mxu0
      %v821 = vadd.f32 0.0, %v820
      %822 = vmatprep.mubr.bf16.mxu0 0
      %823 = vmatmul.mubr.bf16.gmra.mrb[0].mxu0 %v772
      %v824 = vpop.f32.mrb[0].mxu0
      %v825 = vadd.f32 0.0, %v824
      %v826 = vpop.f32.mrb[0].mxu0
      %v827 = vadd.f32 0.0, %v826
      %v828 = vpop.f32.mrb[0].mxu0
      %v829 = vadd.f32 0.0, %v828
      %v830 = vpop.f32.mrb[0].mxu0
      %v831 = vadd.f32 0.0, %v830
      %832 = vdwg.mxu0
      %v833 = vld [vmem:[%s8] sm:$0xff]
      %v834 = vld [vmem:[%s8 + $0x8] sm:$0xff]
      %v835 = vld [vmem:[%s8 + $0x10] sm:$0xff]
      %v836 = vld [vmem:[%s8 + $0x18] sm:$0xff]
      %838 = vset.pattern.permute.xlu0 0
      %839 = vperm.xlu0 %838, %v833
      %v840 = vpop.permute.xlu0 %839
      %843 = vset.pattern.permute.xlu0 0
      %844 = vperm.xlu0 %843, %v834
      %v845 = vpop.permute.xlu0 %844
      %848 = vset.pattern.permute.xlu0 0
      %849 = vperm.xlu0 %848, %v835
      %v850 = vpop.permute.xlu0 %849
      %853 = vset.pattern.permute.xlu0 0
      %854 = vperm.xlu0 %853, %v836
      %v855 = vpop.permute.xlu0 %854
      %v857 = vmul.f32 %v815, %v840
      %v858 = vmul.f32 %v817, %v840
      %v859 = vmul.f32 %v819, %v845
      %v860 = vmul.f32 %v821, %v845
      %v861 = vmul.f32 %v825, %v850
      %v862 = vmul.f32 %v827, %v850
      %v863 = vmul.f32 %v829, %v855
      %v864 = vmul.f32 %v831, %v855
      %v865 = vld [vmem:[%s9] sm:$0xff]
      %v866 = vld [vmem:[%s9 + $0x8] sm:$0xff]
      %v867 = vld [vmem:[%s9 + $0x10] sm:$0xff]
      %v868 = vld [vmem:[%s9 + $0x18] sm:$0xff]
      %870 = vset.pattern.permute.xlu0 0
      %871 = vperm.xlu0 %870, %v865
      %v872 = vpop.permute.xlu0 %871
      %875 = vset.pattern.permute.xlu0 0
      %876 = vperm.xlu0 %875, %v866
      %v877 = vpop.permute.xlu0 %876
      %880 = vset.pattern.permute.xlu0 0
      %881 = vperm.xlu0 %880, %v867
      %v882 = vpop.permute.xlu0 %881
      %885 = vset.pattern.permute.xlu0 0
      %886 = vperm.xlu0 %885, %v868
      %v887 = vpop.permute.xlu0 %886
      %v889 = vadd.f32 %v857, %v872
      %v890 = vadd.f32 %v858, %v872
      %v891 = vadd.f32 %v859, %v877
      %v892 = vadd.f32 %v860, %v877
      %v893 = vadd.f32 %v861, %v882
      %v894 = vadd.f32 %v862, %v882
      %v895 = vadd.f32 %v863, %v887
      %v896 = vadd.f32 %v864, %v887
      %v897 = vld [vmem:[%s10] sm:$0xf]
      %v898 = vld [vmem:[%s10 + $0x4] sm:$0xf]
      %v899 = vld [vmem:[%s10 + $0x8] sm:$0xf]
      %v900 = vld [vmem:[%s10 + $0xc] sm:$0xf]
      %v905 = vunpack.c.l.b16 %v897
      %v906 = vunpack.c.l.b16 %v898
      %v907 = vunpack.c.l.b16 %v899
      %v908 = vunpack.c.l.b16 %v900
      %v909 = vpack.c.b16 %v906, %v905
      %v910 = vpack.c.b16 %v908, %v907
      %v912 = vsel %vm447, %v909, 0
      %v915 = vsel %vm447, %v910, 0
      %917 = vmatprep.subr.bf16.mxu0 %v456
      %918 = vmatpush1.bf16.msra.mxu0 %v453
      %919 = vmatprep.subr.bf16.mxu0 0
      %920 = vmatpush1.bf16.msra.mxu0 0
      %921 = vmatprep.subr.bf16.mxu0 0
      %922 = vmatpush1.bf16.msra.mxu0 0
      %923 = vmatprep.subr.bf16.mxu0 0
      %924 = vmatpush1.bf16.msra.mxu0 0
      %925 = vmatprep.subr.bf16.mxu0 0
      %926 = vmatpush1.bf16.msra.mxu0 0
      %927 = vmatprep.subr.bf16.mxu0 0
      %928 = vmatpush1.bf16.msra.mxu0 0
      %929 = vmatprep.subr.bf16.mxu0 0
      %930 = vmatpush1.bf16.msra.mxu0 0
      %931 = vmatprep.subr.bf16.mxu0 0
      %932 = vmatpush1.bf16.msra.mxu0 0
      %933 = vmatprep.subr.bf16.mxu0 0
      %934 = vmatpush1.bf16.msra.mxu0 0
      %935 = vmatprep.subr.bf16.mxu0 0
      %936 = vmatpush1.bf16.msra.mxu0 0
      %937 = vmatprep.subr.bf16.mxu0 0
      %938 = vmatpush1.bf16.msra.mxu0 0
      %939 = vmatprep.subr.bf16.mxu0 0
      %940 = vmatpush1.bf16.msra.mxu0 0
      %941 = vmatprep.subr.bf16.mxu0 0
      %942 = vmatpush1.bf16.msra.mxu0 0
      %943 = vmatprep.subr.bf16.mxu0 0
      %944 = vmatpush1.bf16.msra.mxu0 0
      %945 = vmatprep.subr.bf16.mxu0 0
      %946 = vmatpush1.bf16.msra.mxu0 0
      %947 = vmatprep.subr.bf16.mxu0 0
      %948 = vmatpush1.bf16.msra.mxu0 0
      %949 = vmatprep.mubr.bf16.mxu0 0
      %950 = vmatmul.mubr.bf16.gmra.mrb[0].mxu0 %v912
      %v951 = vpop.f32.mrb[0].mxu0
      %v952 = vadd.f32 0.0, %v951
      %v953 = vpop.f32.mrb[0].mxu0
      %v954 = vadd.f32 0.0, %v953
      %v955 = vpop.f32.mrb[0].mxu0
      %v956 = vadd.f32 0.0, %v955
      %v957 = vpop.f32.mrb[0].mxu0
      %v958 = vadd.f32 0.0, %v957
      %959 = vmatprep.mubr.bf16.mxu0 0
      %960 = vmatmul.mubr.bf16.gmra.mrb[0].mxu0 %v915
      %v961 = vpop.f32.mrb[0].mxu0
      %v962 = vadd.f32 0.0, %v961
      %v963 = vpop.f32.mrb[0].mxu0
      %v964 = vadd.f32 0.0, %v963
      %v965 = vpop.f32.mrb[0].mxu0
      %v966 = vadd.f32 0.0, %v965
      %v967 = vpop.f32.mrb[0].mxu0
      %v968 = vadd.f32 0.0, %v967
      %969 = vdwg.mxu0
      %v970 = vld [vmem:[%s11] sm:$0xff]
      %v971 = vld [vmem:[%s11 + $0x8] sm:$0xff]
      %v972 = vld [vmem:[%s11 + $0x10] sm:$0xff]
      %v973 = vld [vmem:[%s11 + $0x18] sm:$0xff]
      %975 = vset.pattern.permute.xlu0 0
      %976 = vperm.xlu0 %975, %v970
      %v977 = vpop.permute.xlu0 %976
      %980 = vset.pattern.permute.xlu0 0
      %981 = vperm.xlu0 %980, %v971
      %v982 = vpop.permute.xlu0 %981
      %985 = vset.pattern.permute.xlu0 0
      %986 = vperm.xlu0 %985, %v972
      %v987 = vpop.permute.xlu0 %986
      %990 = vset.pattern.permute.xlu0 0
      %991 = vperm.xlu0 %990, %v973
      %v992 = vpop.permute.xlu0 %991
      %v994 = vmul.f32 %v952, %v977
      %v995 = vmul.f32 %v954, %v977
      %v996 = vmul.f32 %v956, %v982
      %v997 = vmul.f32 %v958, %v982
      %v998 = vmul.f32 %v962, %v987
      %v999 = vmul.f32 %v964, %v987
      %v1000 = vmul.f32 %v966, %v992
      %v1001 = vmul.f32 %v968, %v992
      %v1002 = vld [vmem:[%s12] sm:$0xff]
      %v1003 = vld [vmem:[%s12 + $0x8] sm:$0xff]
      %v1004 = vld [vmem:[%s12 + $0x10] sm:$0xff]
      %v1005 = vld [vmem:[%s12 + $0x18] sm:$0xff]
      %1007 = vset.pattern.permute.xlu0 0
      %1008 = vperm.xlu0 %1007, %v1002
      %v1009 = vpop.permute.xlu0 %1008
      %1012 = vset.pattern.permute.xlu0 0
      %1013 = vperm.xlu0 %1012, %v1003
      %v1014 = vpop.permute.xlu0 %1013
      %1017 = vset.pattern.permute.xlu0 0
      %1018 = vperm.xlu0 %1017, %v1004
      %v1019 = vpop.permute.xlu0 %1018
      %1022 = vset.pattern.permute.xlu0 0
      %1023 = vperm.xlu0 %1022, %v1005
      %v1024 = vpop.permute.xlu0 %1023
      %v1026 = vadd.f32 %v994, %v1009
      %v1027 = vadd.f32 %v995, %v1009
      %v1028 = vadd.f32 %v996, %v1014
      %v1029 = vadd.f32 %v997, %v1014
      %v1030 = vadd.f32 %v998, %v1019
      %v1031 = vadd.f32 %v999, %v1019
      %v1032 = vadd.f32 %v1000, %v1024
      %v1033 = vadd.f32 %v1001, %v1024
      %v1034 = vadd.f32 %v889, %v1026
      %v1035 = vadd.f32 %v890, %v1027
      %v1036 = vadd.f32 %v891, %v1028
      %v1037 = vadd.f32 %v892, %v1029
      %v1038 = vadd.f32 %v893, %v1030
      %v1039 = vadd.f32 %v894, %v1031
      %v1040 = vadd.f32 %v895, %v1032
      %v1041 = vadd.f32 %v896, %v1033
      %v1042 = vmax.f32 %v1034, 0.0
      %v1043 = vmax.f32 %v1035, 0.0
      %v1044 = vmax.f32 %v1036, 0.0
      %v1045 = vmax.f32 %v1037, 0.0
      %v1046 = vmax.f32 %v1038, 0.0
      %v1047 = vmax.f32 %v1039, 0.0
      %v1048 = vmax.f32 %v1040, 0.0
      %v1049 = vmax.f32 %v1041, 0.0
      %1050 = vst [vmem:[%s440] sm:$0xff] %v1042
      %1051 = vst [vmem:[%s440 + $0x8] sm:$0xff] %v1043
      %1052 = vst [vmem:[%s440 + $0x10] sm:$0xff] %v1044
      %1053 = vst [vmem:[%s440 + $0x18] sm:$0xff] %v1045
      %1054 = vst [vmem:[%s440 + $0x20] sm:$0xff] %v1046
      %1055 = vst [vmem:[%s440 + $0x28] sm:$0xff] %v1047
      %1056 = vst [vmem:[%s440 + $0x30] sm:$0xff] %v1048
      %1057 = vst [vmem:[%s440 + $0x38] sm:$0xff] %v1049
      %p1058 = scmp.lt.s32.totalorder %s24, 1
      %s1059 = scalar_select %p1058, %s24, 1
      %s1060 = smul.addr %s1059, 8
      %s1061 = smul.addr %s1060, 8
      %s1062 = scalar_lea.vmem %s13, %s1061
      // Predicated region
      $region73: #{bottleneck_forward.1} parent=71 // pred_check
        %p1063 = pneg %p320
      $region74: #{bottleneck_forward.1} parent=71 // pred_check_branch
        %1065 = sbr.rel (%p1063) target = $region76
      $region75: #{bottleneck_forward.1} parent=71 // pred_region
        _
      $region76: #{bottleneck_forward.1} parent=71 // pred_fallthru
        _
    $region72: #{bottleneck_forward.1} parent=5 // pred_fallthru
      _
    %p1066 = scmp.le.s32.totalorder 2, %s19
    // Predicated region
    $region77: #{bottleneck_forward.1} parent=5 // pred_check
      %p1067 = pneg %p1066
    $region78: #{bottleneck_forward.1} parent=5 // pred_check_branch
      %1069 = sbr.rel (%p1067) target = $region80
    $region79: #{bottleneck_forward.1} parent=5 // pred_region
      %s1070 = ssub.s32 %s19, 2
      // Predicated region
      $region81: #{bottleneck_forward.1} parent=79 // pred_check
        %p1071 = pneg %p326
      $region82: #{bottleneck_forward.1} parent=79 // pred_check_branch
        %1073 = sbr.rel (%p1071) target = $region84
      $region83: #{bottleneck_forward.1} parent=79 // pred_region
        %p1074 = scmp.lt.s32.totalorder %s25, 1
        %s1075 = scalar_select %p1074, %s25, 1
        %s1076 = smul.addr %s1075, 8
        %s1077 = smul.addr %s1076, 8
        %s1078 = scalar_lea.vmem %s13, %s1077
      $region84: #{bottleneck_forward.1} parent=79 // pred_fallthru
        _
    $region80: #{bottleneck_forward.1} parent=5 // pred_fallthru
      _
  $region6: #{bottleneck_forward.1} parent=0 // loop_footer
    %s23 = sadd.s32 1, %s19
  $region7: #{bottleneck_forward.1} parent=0 // loop_footer_branch
    %18 = sbr.rel target = $region3
  $region8: #{bottleneck_forward.1} parent=0 // loop_exit
    _

</llo_original>
